<compile_context>
chip_gen: v5e
topology: v5e:2x2
jax: 0.10.0
libtpu: 0.0.40
codegen_flags: <defaults>
</compile_context>

<pallas_src>
import functools

import jax
import jax.numpy as jnp
from jax.experimental import pallas as pl
from jax.experimental.pallas import tpu as pltpu


_LANE = 128
# Scoped-VMEM request: generous on v5e/v6e (128 MiB physical) and still well
# under v7x's 64 MiB physical VMEM.
_VMEM_LIMIT_BYTES = 48 * 1024 * 1024
# If the full spmm RHS (all rows of x / xw) is at most this many bytes, keep it
# resident in VMEM instead of streaming it per reduction step.
_RESIDENT_XK_BYTES = 4 * 1024 * 1024


# ---------------------------------------------------------------------------
# Kernels
# ---------------------------------------------------------------------------
def _act(v, activation):
    if activation == "relu":
        return jnp.maximum(v, 0.0)
    elif activation == "tanh":
        return jnp.tanh(v)
    else:
        raise NotImplementedError(activation)


def _sage_layer_kernel(*refs, activation, apply_out_act, l2_normalize,
                       pre_transformed, block_k, xk_resident):
    """One GraphSAGE layer on a row tile of nodes.

    grid = (row_tiles, spmm_reduction_tiles); reduction axis is last.
    acc_ref accumulates (adj_tile @ spmm_rhs) in float32 across the reduction.
    """
    if pre_transformed:
        (adj_ref, xk_ref, xi_ref, bagg_ref, wlx_ref, wla_ref, blin_ref,
         o_ref, acc_ref) = refs
        wagg_ref = None
    else:
        (adj_ref, xk_ref, xi_ref, wagg_ref, bagg_ref, wlx_ref, wla_ref,
         blin_ref, o_ref, acc_ref) = refs

    k = pl.program_id(1)

    @pl.when(k == 0)
    def _():
        acc_ref[...] = jnp.zeros_like(acc_ref)

    if xk_resident:
        # Full x (or xw) resides in VMEM; slice the current reduction chunk.
        start = pl.multiple_of(k * block_k, block_k)
        xk = xk_ref[pl.ds(start, block_k), :]
    else:
        xk = xk_ref[...]

    # Partial spmm: adj[row_tile, k_tile] @ rhs[k_tile, :] (bf16 MXU, f32 acc).
    acc_ref[...] += jnp.dot(adj_ref[...], xk,
                            preferred_element_type=jnp.float32)

    @pl.when(k == pl.num_programs(1) - 1)
    def _():
        acc = acc_ref[...]
        # aggregator linear + activation (if pre-transformed, the W_agg matmul
        # already happened before the spmm; only bias + act remain).
        if pre_transformed:
            agg = acc + bagg_ref[...]
        else:
            agg = jnp.dot(acc, wagg_ref[...],
                          preferred_element_type=jnp.float32) + bagg_ref[...]
        agg = _act(agg, activation)

        # linears[i](concat([x, agg], 1)) without materializing the concat:
        #   concat([x, agg]) @ W = x @ W[:C] + agg @ W[C:]
        x_i = xi_ref[...].astype(jnp.float32)
        y = (jnp.dot(x_i, wlx_ref[...], preferred_element_type=jnp.float32)
             + jnp.dot(agg, wla_ref[...], preferred_element_type=jnp.float32)
             + blin_ref[...])

        if apply_out_act:
            y = _act(y, activation)
        if l2_normalize:
            # F.normalize: row-wise L2, eps = 1e-12 (padded cols are zero).
            norm = jnp.sqrt(jnp.sum(y * y, axis=-1, keepdims=True))
            y = y / jnp.maximum(norm, 1e-12)

        o_ref[...] = y.astype(o_ref.dtype)


def _xw_kernel(x_ref, w_ref, o_ref):
    # Transform-then-aggregate pre-pass: xw = x @ W_agg (bias/act applied after
    # the spmm in the layer kernel).
    o_ref[...] = jnp.dot(x_ref[...], w_ref[...],
                         preferred_element_type=jnp.float32).astype(o_ref.dtype)


# ---------------------------------------------------------------------------
# pallas_call wrappers (operate on padded, lane-dense arrays)
# ---------------------------------------------------------------------------
def _pre_transform(x_p, wagg_bf16, *, block_m):
    n_pad, c_pad = x_p.shape
    h_pad = wagg_bf16.shape[1]
    flops = 2 * n_pad * c_pad * h_pad
    bytes_accessed = (x_p.size * x_p.dtype.itemsize
                      + wagg_bf16.size * wagg_bf16.dtype.itemsize
                      + n_pad * h_pad * 2)
    return pl.pallas_call(
        _xw_kernel,
        out_shape=jax.ShapeDtypeStruct((n_pad, h_pad), jnp.bfloat16),
        grid=(n_pad // block_m,),
        in_specs=[
            pl.BlockSpec((block_m, c_pad), lambda i: (i, 0)),
            pl.BlockSpec((c_pad, h_pad), lambda i: (0, 0)),   # resident
        ],
        out_specs=pl.BlockSpec((block_m, h_pad), lambda i: (i, 0)),
        compiler_params=pltpu.CompilerParams(
            dimension_semantics=("parallel",),
            vmem_limit_bytes=_VMEM_LIMIT_BYTES),
        cost_estimate=pl.CostEstimate(flops=int(flops), transcendentals=0,
                                      bytes_accessed=int(bytes_accessed)),
    )(x_p, wagg_bf16)


def _sage_layer(spmm_x_p, xi_p, adj_p, wagg_p, bagg_p, wlx_p, wla_p, blin_p, *,
                activation, apply_out_act, l2_normalize,
                block_m, block_k, out_dtype):
    n_pad, cs_pad = spmm_x_p.shape       # spmm RHS width (c_in_pad or h_pad)
    c_pad = xi_p.shape[1]                # concat-path x width
    h_pad = bagg_p.shape[1]
    co_pad = wlx_p.shape[1]
    pre_transformed = wagg_p is None
    assert n_pad % block_m == 0 and n_pad % block_k == 0

    grid = (n_pad // block_m, n_pad // block_k)

    # Keep the full spmm RHS resident in VMEM when small -> no re-streaming of
    # x across the reduction axis.
    xk_resident = (spmm_x_p.size * spmm_x_p.dtype.itemsize) <= _RESIDENT_XK_BYTES

    in_specs = [
        # adjacency tile (bf16): the dominant HBM stream.
        pl.BlockSpec((block_m, block_k), lambda i, k: (i, k)),
    ]
    if xk_resident:
        in_specs.append(pl.BlockSpec((n_pad, cs_pad), lambda i, k: (0, 0)))
    else:
        in_specs.append(pl.BlockSpec((block_k, cs_pad), lambda i, k: (k, 0)))
    # x rows for the concat path (only re-DMA'd when the row tile changes).
    in_specs.append(pl.BlockSpec((block_m, c_pad), lambda i, k: (i, 0)))
    args = [adj_p, spmm_x_p, xi_p]

    if not pre_transformed:
        in_specs.append(pl.BlockSpec((cs_pad, h_pad), lambda i, k: (0, 0)))
        args.append(wagg_p)
    in_specs += [
        pl.BlockSpec((1, h_pad), lambda i, k: (0, 0)),       # b_agg
        pl.BlockSpec((c_pad, co_pad), lambda i, k: (0, 0)),  # W_lin[:C]  (resident)
        pl.BlockSpec((h_pad, co_pad), lambda i, k: (0, 0)),  # W_lin[C:]  (resident)
        pl.BlockSpec((1, co_pad), lambda i, k: (0, 0)),      # b_lin
    ]
    args += [bagg_p, wlx_p, wla_p, blin_p]

    kernel = functools.partial(
        _sage_layer_kernel,
        activation=activation,
        apply_out_act=apply_out_act,
        l2_normalize=l2_normalize,
        pre_transformed=pre_transformed,
        block_k=block_k,
        xk_resident=xk_resident,
    )

    flops = 2 * n_pad * n_pad * cs_pad
    if not pre_transformed:
        flops += 2 * n_pad * cs_pad * h_pad
    flops += 2 * n_pad * (c_pad * co_pad + h_pad * co_pad)
    trans = 0
    if activation == "tanh":
        trans = n_pad * (h_pad + (co_pad if apply_out_act else 0))
    bytes_accessed = (adj_p.size * adj_p.dtype.itemsize
                      + spmm_x_p.size * spmm_x_p.dtype.itemsize
                      + xi_p.size * xi_p.dtype.itemsize
                      + n_pad * co_pad * jnp.dtype(out_dtype).itemsize
                      + 4 * (c_pad * co_pad + h_pad * co_pad + h_pad + co_pad)
                      + (0 if pre_transformed else 4 * cs_pad * h_pad))

    return pl.pallas_call(
        kernel,
        out_shape=jax.ShapeDtypeStruct((n_pad, co_pad), out_dtype),
        grid=grid,
        in_specs=in_specs,
        out_specs=pl.BlockSpec((block_m, co_pad), lambda i, k: (i, 0)),
        scratch_shapes=[pltpu.VMEM((block_m, cs_pad), jnp.float32)],
        compiler_params=pltpu.CompilerParams(
            dimension_semantics=("parallel", "arbitrary"),
            vmem_limit_bytes=_VMEM_LIMIT_BYTES),
        cost_estimate=pl.CostEstimate(flops=int(flops),
                                      transcendentals=int(trans),
                                      bytes_accessed=int(bytes_accessed)),
    )(*args)


# ---------------------------------------------------------------------------
# Parameters (matches torch __init__: xavier_uniform weights, zero biases)
# ---------------------------------------------------------------------------
def init_graphsage_params(key, in_channels, hidden_channels, out_channels,
                          num_layers, dtype=jnp.float32):
    def xavier(k, fan_in, fan_out):
        a = (6.0 / (fan_in + fan_out)) ** 0.5
        # torch Linear weight is [out, in]; we store the transpose [in, out].
        return jax.random.uniform(k, (fan_in, fan_out), dtype=dtype,
                                  minval=-a, maxval=a)

    params = []
    for i in range(num_layers):
        c_in = in_channels if i == 0 else hidden_channels
        c_out = out_channels if i == num_layers - 1 else hidden_channels
        key, k1, k2 = jax.random.split(key, 3)
        w_agg = xavier(k1, c_in, hidden_channels)              # aggregators[i]
        b_agg = jnp.zeros((hidden_channels,), dtype)
        w_lin = xavier(k2, c_in + hidden_channels, c_out)      # linears[i]
        b_lin = jnp.zeros((c_out,), dtype)
        params.append((w_agg, b_agg, w_lin, b_lin))
    return params


# ---------------------------------------------------------------------------
# Full forward
# ---------------------------------------------------------------------------
def _round_up(v, m):
    return ((v + m - 1) // m) * m


def _pad2(a, rows, cols):
    return jnp.pad(a, ((0, rows - a.shape[0]), (0, cols - a.shape[1])))


def _choose_blocks(n, lane=_LANE):
    """Decoupled (block_m rows, block_k reduction) tiles + padded node count.

    Targets 512x1024 (bf16 adj tile = 1 MiB, double-buffered) which amortizes
    the ~0.35us grid-step overhead while fitting comfortably inside v7x's
    64 MiB VMEM; small graphs collapse to a single tile. Keeps >= 2 row tiles
    when possible so v7x's two TensorCores both get work on the 'parallel'
    axis.
    """
    n_pad0 = _round_up(max(n, 1), lane)
    block_m = min(512, n_pad0)
    n_pad = _round_up(n_pad0, block_m)
    block_k = block_m
    for bk in range(min(1024, n_pad), block_m - 1, -block_m):
        if n_pad % bk == 0:
            block_k = bk
            break
    if n_pad // block_m < 2 and n_pad >= 2 * lane:
        for bm in range((n_pad // 2) // lane * lane, lane - 1, -lane):
            if n_pad % bm == 0:
                block_m = bm
                break
    return block_m, block_k, n_pad


def graphsage_forward(x, adj, params, activation):
    activation = activation.lower()
    num_layers = len(params)
    n = x.shape[0]
    out_c = params[-1][2].shape[1]

    block_m, block_k, n_pad = _choose_blocks(n)

    # bf16 spmm operands: halves the dominant N^2 adjacency HBM stream and
    # runs the MXU at its bf16 rate (f32 accumulation keeps it accurate).
    adj_p = _pad2(adj, n_pad, n_pad).astype(jnp.bfloat16)
    x_p = _pad2(x, n_pad, _round_up(x.shape[1], _LANE)).astype(jnp.bfloat16)

    for i, (w_agg, b_agg, w_lin, b_lin) in enumerate(params):
        last = i == num_layers - 1
        c_in, h = w_agg.shape
        c_out = w_lin.shape[1]
        c_in_pad = _round_up(c_in, _LANE)
        h_pad = _round_up(h, _LANE)
        c_out_pad = _round_up(c_out, _LANE)
        assert x_p.shape[1] == c_in_pad

        wagg_p = _pad2(w_agg, c_in_pad, h_pad).astype(jnp.float32)
        bagg_p = _pad2(b_agg.reshape(1, -1), 1, h_pad).astype(jnp.float32)
        wlx_p = _pad2(w_lin[:c_in, :], c_in_pad, c_out_pad).astype(jnp.float32)
        wla_p = _pad2(w_lin[c_in:, :], h_pad, c_out_pad).astype(jnp.float32)
        blin_p = _pad2(b_lin.reshape(1, -1), 1, c_out_pad).astype(jnp.float32)

        if c_in_pad > h_pad:
            # Transform-then-aggregate: spmm the narrower xw = x @ W_agg
            # (bias + activation applied after the reduction in the kernel).
            spmm_x_p = _pre_transform(x_p, wagg_p.astype(jnp.bfloat16),
                                      block_m=block_m)
            wagg_for_kernel = None
        else:
            spmm_x_p = x_p
            wagg_for_kernel = wagg_p

        # Inter-layer activations in bf16; final (normalized) output in f32.
        out_dtype = jnp.float32 if last else jnp.bfloat16
        x_p = _sage_layer(spmm_x_p, x_p, adj_p, wagg_for_kernel, bagg_p,
                          wlx_p, wla_p, blin_p,
                          activation=activation,
                          apply_out_act=not last,
                          l2_normalize=last,
                          block_m=block_m, block_k=block_k,
                          out_dtype=out_dtype)
        # TODO(synk): training-mode dropout here (inference mode -> identity).

    return x_p[:n, :out_c]


# ---------------------------------------------------------------------------
# Demo / self-check
# ---------------------------------------------------------------------------
def _ref_forward(x, adj, params, activation):
    """Pure-JAX f32 reference of the torch forward (eval mode)."""
    def act(v):
        return jnp.maximum(v, 0.0) if activation == "relu" else jnp.tanh(v)
    h = x
    L = len(params)
    for i, (w_agg, b_agg, w_lin, b_lin) in enumerate(params):
        agg = act(adj @ h @ w_agg + b_agg)
        h = jnp.concatenate([h, agg], axis=1) @ w_lin + b_lin
        if i < L - 1:
            h = act(h)
    norm = jnp.sqrt(jnp.sum(h * h, axis=1, keepdims=True))
    return h / jnp.maximum(norm, 1e-12)


def _run_case(case_idx, num_nodes, in_channels, hidden_channels, out_channels,
              num_layers, activation, atol):
    key = jax.random.fold_in(jax.random.PRNGKey(0), case_idx)
    k_x, k_adj, k_p = jax.random.split(key, 3)

    x = jax.random.normal(k_x, (num_nodes, in_channels), dtype=jnp.float32)

    # Row-normalized adjacency with self loops (dense stand-in for adj_norm).
    a = (jax.random.uniform(k_adj, (num_nodes, num_nodes)) < 0.4).astype(jnp.float32)
    a = jnp.maximum(a, a.T) + jnp.eye(num_nodes, dtype=jnp.float32)
    adj = a / a.sum(axis=1, keepdims=True)

    params = init_graphsage_params(k_p, in_channels, hidden_channels,
                                   out_channels, num_layers)

    out = jax.block_until_ready(graphsage_forward(x, adj, params, activation))
    ref = _ref_forward(x, adj, params, activation)

    assert out.shape == (num_nodes, out_channels), out.shape
    err = float(jnp.max(jnp.abs(out - ref)))
    # bf16 spmm operands / bf16 inter-layer activations -> relaxed tolerance
    # vs the exact f32 reference.
    assert jnp.allclose(out, ref, atol=atol, rtol=atol), err
    return err


if __name__ == "__main__":
    # Case A: standard path (c_in_pad == h_pad), relu, 3 layers.
    _run_case(0, num_nodes=8, in_channels=16, hidden_channels=32,
              out_channels=8, num_layers=3, activation="relu", atol=3e-2)
    # Case B: transform-then-aggregate path (c_in_pad > h_pad), tanh, 2 layers.
    _run_case(1, num_nodes=12, in_channels=192, hidden_channels=24,
              out_channels=6, num_layers=2, activation="tanh", atol=3e-2)
    print("KERNEL_OK")
</pallas_src>

<mosaic_0001>
module attributes {stable_mosaic.version = 11 : i64} {
  func.func @_sage_layer_kernel(%arg0: i32, %arg1: i32, %arg2: memref<128x128xbf16, #tpu.memory_space<vmem>>, %arg3: memref<128x128xbf16, #tpu.memory_space<vmem>>, %arg4: memref<128x128xbf16, #tpu.memory_space<vmem>>, %arg5: memref<128x128xf32, #tpu.memory_space<vmem>>, %arg6: memref<1x128xf32, #tpu.memory_space<vmem>>, %arg7: memref<128x128xf32, #tpu.memory_space<vmem>>, %arg8: memref<128x128xf32, #tpu.memory_space<vmem>>, %arg9: memref<1x128xf32, #tpu.memory_space<vmem>>, %arg10: memref<128x128xbf16, #tpu.memory_space<vmem>>, %arg11: memref<128x128xf32, #tpu.memory_space<vmem>>) attributes {dimension_semantics = [#tpu.dimension_semantics<parallel>, #tpu.dimension_semantics<arbitrary>], iteration_bounds = array<i64: 1, 1>, scalar_prefetch = 0 : i64, scratch_operands = 1 : i64, tpu.core_type = #tpu.core_type<tc>, window_params = [{transform_indices = @transform_0, window_bounds = array<i64: 128, 128>}, {pipeline_mode = #tpu.pipeline_mode<synchronous>, transform_indices = @transform_1, window_bounds = array<i64: 128, 128>}, {transform_indices = @transform_2, window_bounds = array<i64: 128, 128>}, {pipeline_mode = #tpu.pipeline_mode<synchronous>, transform_indices = @transform_3, window_bounds = array<i64: 128, 128>}, {pipeline_mode = #tpu.pipeline_mode<synchronous>, transform_indices = @transform_4, window_bounds = array<i64: 1, 128>}, {pipeline_mode = #tpu.pipeline_mode<synchronous>, transform_indices = @transform_5, window_bounds = array<i64: 128, 128>}, {pipeline_mode = #tpu.pipeline_mode<synchronous>, transform_indices = @transform_6, window_bounds = array<i64: 128, 128>}, {pipeline_mode = #tpu.pipeline_mode<synchronous>, transform_indices = @transform_7, window_bounds = array<i64: 1, 128>}, {transform_indices = @transform_8, window_bounds = array<i64: 128, 128>}]} {
    %c0_i32 = arith.constant 0 : i32
    %0 = arith.cmpi eq, %arg1, %c0_i32 : i32
    %1 = arith.extui %0 : i1 to i32
    %c0_i32_0 = arith.constant 0 : i32
    %2 = arith.cmpi ne, %1, %c0_i32_0 : i32
    scf.if %2 {
      %cst_9 = arith.constant 0.000000e+00 : f32
      %15 = vector.broadcast %cst_9 : f32 to vector<128x128xf32>
      %c0_10 = arith.constant 0 : index
      %c0_11 = arith.constant 0 : index
      %16 = vector.load %arg11[%c0_10, %c0_11] : memref<128x128xf32, #tpu.memory_space<vmem>>, vector<128x128xf32>
      tpu.vector_store %arg11[%c0_10, %c0_11], %15 {strides = array<i32>} : memref<128x128xf32, #tpu.memory_space<vmem>>, vector<128x128xf32>,
    } else {
    }
    %c128_i32 = arith.constant 128 : i32
    %3 = arith.muli %arg1, %c128_i32 : i32
    %4 = tpu.assume_multiple %3, 128 : i32
    %5 = arith.index_cast %4 : i32 to index
    %c0 = arith.constant 0 : index
    %6 = vector.load %arg3[%5, %c0] : memref<128x128xbf16, #tpu.memory_space<vmem>>, vector<128x128xbf16>
    %c0_1 = arith.constant 0 : index
    %c0_2 = arith.constant 0 : index
    %7 = vector.load %arg11[%c0_1, %c0_2] : memref<128x128xf32, #tpu.memory_space<vmem>>, vector<128x128xf32>
    %c0_3 = arith.constant 0 : index
    %c0_4 = arith.constant 0 : index
    %8 = vector.load %arg2[%c0_3, %c0_4] : memref<128x128xbf16, #tpu.memory_space<vmem>>, vector<128x128xbf16>
    %cst = arith.constant dense<0.000000e+00> : vector<128x128xf32>
    %9 = tpu.matmul %8, %6, %cst {dimension_numbers = #tpu.dot_dimension_numbers<[1], [0], [0], [1], [0, 0, 1, 1], [], []>} : vector<128x128xbf16>, vector<128x128xbf16>, vector<128x128xf32> -> vector<128x128xf32>
    %10 = arith.addf %7, %9 : vector<128x128xf32>
    %c0_5 = arith.constant 0 : index
    %c0_6 = arith.constant 0 : index
    %11 = vector.load %arg11[%c0_5, %c0_6] : memref<128x128xf32, #tpu.memory_space<vmem>>, vector<128x128xf32>
    tpu.vector_store %arg11[%c0_5, %c0_6], %10 {strides = array<i32>} : memref<128x128xf32, #tpu.memory_space<vmem>>, vector<128x128xf32>,
    %c0_i32_7 = arith.constant 0 : i32
    %12 = arith.cmpi eq, %arg1, %c0_i32_7 : i32
    %13 = arith.extui %12 : i1 to i32
    %c0_i32_8 = arith.constant 0 : i32
    %14 = arith.cmpi ne, %13, %c0_i32_8 : i32
    scf.if %14 {
      %c0_9 = arith.constant 0 : index
      %c0_10 = arith.constant 0 : index
      %15 = vector.load %arg11[%c0_9, %c0_10] : memref<128x128xf32, #tpu.memory_space<vmem>>, vector<128x128xf32>
      %c0_11 = arith.constant 0 : index
      %c0_12 = arith.constant 0 : index
      %16 = vector.load %arg5[%c0_11, %c0_12] : memref<128x128xf32, #tpu.memory_space<vmem>>, vector<128x128xf32>
      %cst_13 = arith.constant dense<0.000000e+00> : vector<128x128xf32>
      %17 = tpu.matmul %15, %16, %cst_13 {dimension_numbers = #tpu.dot_dimension_numbers<[1], [0], [0], [1], [0, 0, 1, 1], [], []>} : vector<128x128xf32>, vector<128x128xf32>, vector<128x128xf32> -> vector<128x128xf32>
      %c0_14 = arith.constant 0 : index
      %c0_15 = arith.constant 0 : index
      %18 = vector.load %arg6[%c0_14, %c0_15] : memref<1x128xf32, #tpu.memory_space<vmem>>, vector<1x128xf32>
      %19 = vector.broadcast %18 : vector<1x128xf32> to vector<128x128xf32>
      %20 = arith.addf %17, %19 : vector<128x128xf32>
      %cst_16 = arith.constant 0.000000e+00 : f32
      %21 = vector.broadcast %cst_16 : f32 to vector<128x128xf32>
      %22 = arith.maximumf %20, %21 : vector<128x128xf32>
      %c0_17 = arith.constant 0 : index
      %c0_18 = arith.constant 0 : index
      %23 = vector.load %arg4[%c0_17, %c0_18] : memref<128x128xbf16, #tpu.memory_space<vmem>>, vector<128x128xbf16>
      %24 = arith.extf %23 : vector<128x128xbf16> to vector<128x128xf32>
      %c0_19 = arith.constant 0 : index
      %c0_20 = arith.constant 0 : index
      %25 = vector.load %arg7[%c0_19, %c0_20] : memref<128x128xf32, #tpu.memory_space<vmem>>, vector<128x128xf32>
      %cst_21 = arith.constant dense<0.000000e+00> : vector<128x128xf32>
      %26 = tpu.matmul %24, %25, %cst_21 {dimension_numbers = #tpu.dot_dimension_numbers<[1], [0], [0], [1], [0, 0, 1, 1], [], []>} : vector<128x128xf32>, vector<128x128xf32>, vector<128x128xf32> -> vector<128x128xf32>
      %c0_22 = arith.constant 0 : index
      %c0_23 = arith.constant 0 : index
      %27 = vector.load %arg8[%c0_22, %c0_23] : memref<128x128xf32, #tpu.memory_space<vmem>>, vector<128x128xf32>
      %cst_24 = arith.constant dense<0.000000e+00> : vector<128x128xf32>
      %28 = tpu.matmul %22, %27, %cst_24 {dimension_numbers = #tpu.dot_dimension_numbers<[1], [0], [0], [1], [0, 0, 1, 1], [], []>} : vector<128x128xf32>, vector<128x128xf32>, vector<128x128xf32> -> vector<128x128xf32>
      %29 = arith.addf %26, %28 : vector<128x128xf32>
      %c0_25 = arith.constant 0 : index
      %c0_26 = arith.constant 0 : index
      %30 = vector.load %arg9[%c0_25, %c0_26] : memref<1x128xf32, #tpu.memory_space<vmem>>, vector<1x128xf32>
      %31 = vector.broadcast %30 : vector<1x128xf32> to vector<128x128xf32>
      %32 = arith.addf %29, %31 : vector<128x128xf32>
      %cst_27 = arith.constant 0.000000e+00 : f32
      %33 = vector.broadcast %cst_27 : f32 to vector<128x128xf32>
      %34 = arith.maximumf %32, %33 : vector<128x128xf32>
      %35 = arith.truncf %34 : vector<128x128xf32> to vector<128x128xbf16>
      %c0_28 = arith.constant 0 : index
      %c0_29 = arith.constant 0 : index
      %36 = vector.load %arg10[%c0_28, %c0_29] : memref<128x128xbf16, #tpu.memory_space<vmem>>, vector<128x128xbf16>
      tpu.vector_store %arg10[%c0_28, %c0_29], %35 {strides = array<i32>} : memref<128x128xbf16, #tpu.memory_space<vmem>>, vector<128x128xbf16>,
    } else {
    }
    return
  }
  func.func @transform_0(%arg0: i32, %arg1: i32) -> (i32, i32) {
    %c0_i32 = arith.constant 0 : i32
    return %arg0, %arg1 : i32, i32
  }
  func.func @transform_1(%arg0: i32, %arg1: i32) -> (i32, i32) {
    %c0_i32 = arith.constant 0 : i32
    %c0_i32_0 = arith.constant 0 : i32
    %c0_i32_1 = arith.constant 0 : i32
    return %c0_i32, %c0_i32_0 : i32, i32
  }
  func.func @transform_2(%arg0: i32, %arg1: i32) -> (i32, i32) {
    %c0_i32 = arith.constant 0 : i32
    %c0_i32_0 = arith.constant 0 : i32
    return %arg0, %c0_i32 : i32, i32
  }
  func.func @transform_3(%arg0: i32, %arg1: i32) -> (i32, i32) {
    %c0_i32 = arith.constant 0 : i32
    %c0_i32_0 = arith.constant 0 : i32
    %c0_i32_1 = arith.constant 0 : i32
    return %c0_i32, %c0_i32_0 : i32, i32
  }
  func.func @transform_4(%arg0: i32, %arg1: i32) -> (i32, i32) {
    %c0_i32 = arith.constant 0 : i32
    %c0_i32_0 = arith.constant 0 : i32
    %c0_i32_1 = arith.constant 0 : i32
    return %c0_i32, %c0_i32_0 : i32, i32
  }
  func.func @transform_5(%arg0: i32, %arg1: i32) -> (i32, i32) {
    %c0_i32 = arith.constant 0 : i32
    %c0_i32_0 = arith.constant 0 : i32
    %c0_i32_1 = arith.constant 0 : i32
    return %c0_i32, %c0_i32_0 : i32, i32
  }
  func.func @transform_6(%arg0: i32, %arg1: i32) -> (i32, i32) {
    %c0_i32 = arith.constant 0 : i32
    %c0_i32_0 = arith.constant 0 : i32
    %c0_i32_1 = arith.constant 0 : i32
    return %c0_i32, %c0_i32_0 : i32, i32
  }
  func.func @transform_7(%arg0: i32, %arg1: i32) -> (i32, i32) {
    %c0_i32 = arith.constant 0 : i32
    %c0_i32_0 = arith.constant 0 : i32
    %c0_i32_1 = arith.constant 0 : i32
    return %c0_i32, %c0_i32_0 : i32, i32
  }
  func.func @transform_8(%arg0: i32, %arg1: i32) -> (i32, i32) {
    %c0_i32 = arith.constant 0 : i32
    %c0_i32_0 = arith.constant 0 : i32
    return %arg0, %c0_i32 : i32, i32
  }
}

</mosaic_0001>

<llo_original>
// kernel: tpu_custom_call.1
$region0: #{tpu_custom_call.1}
  #allocation0 [shape = 'u32[]', space=smem, size = 0x4, offset = 0x4, fixed_abs, tag = 'smem constant byte address 0x4 - core index']
  #allocation1 [shape = 'u32[72,128]{1,0:T(1,128)}', space=vmem, size = 0x9000, scoped, tag = 'internal scratch']
  #allocation2 [shape = 'f32[128,128]{1,0:T(8,128)}', space=vmem, size = 0x10000, scoped, tag = 'scratch operand']
  %s0 = inlined_call_operand.hbm [shape: bf16[128,128], index: 0, kind: input, shape index: {}]
  %s1 = inlined_call_operand.hbm [shape: bf16[128,128], index: 1, kind: input, shape index: {}]
  %s2 = inlined_call_operand.hbm [shape: bf16[128,128], index: 2, kind: input, shape index: {}]
  %s3 = inlined_call_operand.hbm [shape: f32[128,128], index: 3, kind: input, shape index: {}]
  %s4 = inlined_call_operand.vmem [shape: f32[1,128], index: 4, kind: input, shape index: {}]
  %s5 = inlined_call_operand.hbm [shape: f32[128,128], index: 5, kind: input, shape index: {}]
  %s6 = inlined_call_operand.hbm [shape: f32[128,128], index: 6, kind: input, shape index: {}]
  %s7 = inlined_call_operand.vmem [shape: f32[1,128], index: 7, kind: input, shape index: {}]
  %s8 = inlined_call_operand.hbm [shape: bf16[128,128], index: 8, kind: output, shape index: {}]
  %s9 = sld [smem:[#allocation0]]
  $region74: #{tpu_custom_call.1} parent=0
    _
  %s11 = ssub.s32 1, %s9
  %s12 = scalar_select 0, %s11, %s9
  $region1: #{tpu_custom_call.1} parent=0
    #allocation3 [shape = 'u8[32768]{0}', space=vmem, size = 0x8000, scoped, tag = 'input window, operand 0, single buffered']
    #allocation4 [shape = 's32[1]{0}', space=sflag, size = 0x4, scoped, tag = 'scoped memory for tpu_custom_call.1']
    #allocation5 [shape = 's32[1]{0}', space=sflag, size = 0x4, scoped, tag = 'scoped memory for tpu_custom_call.1']
    #allocation6 [shape = 'u8[32768]{0}', space=vmem, size = 0x8000, scoped, tag = 'input window, operand 1, single buffered']
    #allocation7 [shape = 's32[1]{0}', space=sflag, size = 0x4, scoped, tag = 'scoped memory for tpu_custom_call.1']
    #allocation8 [shape = 'u8[32768]{0}', space=vmem, size = 0x8000, scoped, tag = 'input window, operand 2, single buffered']
    #allocation9 [shape = 'u8[65536]{0}', space=vmem, size = 0x10000, scoped, tag = 'input window, operand 3, single buffered']
    #allocation10 [shape = 's32[1]{0}', space=sflag, size = 0x4, scoped, tag = 'scoped memory for tpu_custom_call.1']
    #allocation11 [shape = 'u8[65536]{0}', space=vmem, size = 0x10000, scoped, tag = 'input window, operand 5, single buffered']
    #allocation12 [shape = 'u8[65536]{0}', space=vmem, size = 0x10000, scoped, tag = 'input window, operand 6, single buffered']
    #allocation13 [shape = 's32[1]{0}', space=sflag, size = 0x4, scoped, tag = 'scoped memory for tpu_custom_call.1']
    #allocation14 [shape = 'u8[32768]{0}', space=vmem, size = 0x8000, scoped, tag = 'output window, operand 0, single buffered']
    %13 = vsyncpa [#allocation4], 0
    %14 = vsyncpa [#allocation7], 0
    %15 = vsyncpa [#allocation10], 0
    %16 = vsyncpa [#allocation13], 0
    %17 = vsyncpa [#allocation5], 0
    // Predicated region
    $region2: #{tpu_custom_call.1} parent=1 // pred_check
      _
    $region3: #{tpu_custom_call.1} parent=1 // pred_check_branch
      %19 = sbr.rel (0) target = $region5
    $region4: #{tpu_custom_call.1} parent=1 // pred_region
      %21 = vsyncadd [#allocation4], 0
      %s22 = sshll.u32 %s0, 4
      %s23 = int_to_ptr.hbm [resolvable:$true] %s22
      %s24 = sshll.u32 [#allocation3], 4
      %s25 = int_to_ptr.vmem [resolvable:$true] %s24
      %30 = dma.hbm_to_vmem [thread:$0]  %s23, 1024, %s25, [#allocation4], 64, 64, 4
    $region5: #{tpu_custom_call.1} parent=1 // pred_fallthru
      _
    // Predicated region
    $region6: #{tpu_custom_call.1} parent=1 // pred_check
      _
    $region7: #{tpu_custom_call.1} parent=1 // pred_check_branch
      %32 = sbr.rel (0) target = $region9
    $region8: #{tpu_custom_call.1} parent=1 // pred_region
      %34 = vsyncadd [#allocation7], 0
      %s35 = sshll.u32 %s1, 4
      %s36 = int_to_ptr.hbm [resolvable:$true] %s35
      %s37 = sshll.u32 [#allocation6], 4
      %s38 = int_to_ptr.vmem [resolvable:$true] %s37
      %43 = dma.hbm_to_vmem [thread:$0]  %s36, 1024, %s38, [#allocation7], 64, 64, 4
    $region9: #{tpu_custom_call.1} parent=1 // pred_fallthru
      _
    // Predicated region
    $region10: #{tpu_custom_call.1} parent=1 // pred_check
      _
    $region11: #{tpu_custom_call.1} parent=1 // pred_check_branch
      %45 = sbr.rel (0) target = $region13
    $region12: #{tpu_custom_call.1} parent=1 // pred_region
      %47 = vsyncadd [#allocation7], 0
      %s48 = sshll.u32 %s2, 4
      %s49 = int_to_ptr.hbm [resolvable:$true] %s48
      %s50 = sshll.u32 [#allocation8], 4
      %s51 = int_to_ptr.vmem [resolvable:$true] %s50
      %56 = dma.hbm_to_vmem [thread:$0]  %s49, 1024, %s51, [#allocation7], 64, 64, 4
    $region13: #{tpu_custom_call.1} parent=1 // pred_fallthru
      _
    // Predicated region
    $region14: #{tpu_custom_call.1} parent=1 // pred_check
      _
    $region15: #{tpu_custom_call.1} parent=1 // pred_check_branch
      %58 = sbr.rel (0) target = $region17
    $region16: #{tpu_custom_call.1} parent=1 // pred_region
      %60 = vsyncadd [#allocation10], 0
      %s61 = sshll.u32 %s3, 4
      %s62 = int_to_ptr.hbm [resolvable:$true] %s61
      %s63 = sshll.u32 [#allocation9], 4
      %s64 = int_to_ptr.vmem [resolvable:$true] %s63
      %69 = dma.hbm_to_vmem [thread:$0]  %s62, 2048, %s64, [#allocation10], 128, 128, 8
    $region17: #{tpu_custom_call.1} parent=1 // pred_fallthru
      _
    // Predicated region
    $region18: #{tpu_custom_call.1} parent=1 // pred_check
      _
    $region19: #{tpu_custom_call.1} parent=1 // pred_check_branch
      %71 = sbr.rel (0) target = $region21
    $region20: #{tpu_custom_call.1} parent=1 // pred_region
      _
    $region21: #{tpu_custom_call.1} parent=1 // pred_fallthru
      _
    // Predicated region
    $region22: #{tpu_custom_call.1} parent=1 // pred_check
      _
    $region23: #{tpu_custom_call.1} parent=1 // pred_check_branch
      %73 = sbr.rel (0) target = $region25
    $region24: #{tpu_custom_call.1} parent=1 // pred_region
      %75 = vsyncadd [#allocation10], 0
      %s76 = sshll.u32 %s5, 4
      %s77 = int_to_ptr.hbm [resolvable:$true] %s76
      %s78 = sshll.u32 [#allocation11], 4
      %s79 = int_to_ptr.vmem [resolvable:$true] %s78
      %84 = dma.hbm_to_vmem [thread:$0]  %s77, 2048, %s79, [#allocation10], 128, 128, 8
    $region25: #{tpu_custom_call.1} parent=1 // pred_fallthru
      _
    // Predicated region
    $region26: #{tpu_custom_call.1} parent=1 // pred_check
      _
    $region27: #{tpu_custom_call.1} parent=1 // pred_check_branch
      %86 = sbr.rel (0) target = $region29
    $region28: #{tpu_custom_call.1} parent=1 // pred_region
      %88 = vsyncadd [#allocation13], 0
      %s89 = sshll.u32 %s6, 4
      %s90 = int_to_ptr.hbm [resolvable:$true] %s89
      %s91 = sshll.u32 [#allocation12], 4
      %s92 = int_to_ptr.vmem [resolvable:$true] %s91
      %97 = dma.hbm_to_vmem [thread:$0]  %s90, 2048, %s92, [#allocation13], 128, 128, 8
    $region29: #{tpu_custom_call.1} parent=1 // pred_fallthru
      _
    // Predicated region
    $region30: #{tpu_custom_call.1} parent=1 // pred_check
      _
    $region31: #{tpu_custom_call.1} parent=1 // pred_check_branch
      %99 = sbr.rel (0) target = $region33
    $region32: #{tpu_custom_call.1} parent=1 // pred_region
      _
    $region33: #{tpu_custom_call.1} parent=1 // pred_fallthru
      _
    // Predicated region
    $region34: #{tpu_custom_call.1} parent=1 // pred_check
      _
    $region35: #{tpu_custom_call.1} parent=1 // pred_check_branch
      %101 = sbr.rel (0) target = $region37
    $region36: #{tpu_custom_call.1} parent=1 // pred_region
      %103 = dma.done [#allocation4], 1024
    $region37: #{tpu_custom_call.1} parent=1 // pred_fallthru
      _
    // Predicated region
    $region38: #{tpu_custom_call.1} parent=1 // pred_check
      _
    $region39: #{tpu_custom_call.1} parent=1 // pred_check_branch
      %105 = sbr.rel (0) target = $region41
    $region40: #{tpu_custom_call.1} parent=1 // pred_region
      %107 = dma.done [#allocation7], 1024
    $region41: #{tpu_custom_call.1} parent=1 // pred_fallthru
      _
    // Predicated region
    $region42: #{tpu_custom_call.1} parent=1 // pred_check
      _
    $region43: #{tpu_custom_call.1} parent=1 // pred_check_branch
      %109 = sbr.rel (0) target = $region45
    $region44: #{tpu_custom_call.1} parent=1 // pred_region
      %111 = dma.done [#allocation7], 1024
    $region45: #{tpu_custom_call.1} parent=1 // pred_fallthru
      _
    // Predicated region
    $region46: #{tpu_custom_call.1} parent=1 // pred_check
      _
    $region47: #{tpu_custom_call.1} parent=1 // pred_check_branch
      %113 = sbr.rel (0) target = $region49
    $region48: #{tpu_custom_call.1} parent=1 // pred_region
      %115 = dma.done [#allocation10], 2048
    $region49: #{tpu_custom_call.1} parent=1 // pred_fallthru
      _
    // Predicated region
    $region50: #{tpu_custom_call.1} parent=1 // pred_check
      _
    $region51: #{tpu_custom_call.1} parent=1 // pred_check_branch
      %117 = sbr.rel (0) target = $region53
    $region52: #{tpu_custom_call.1} parent=1 // pred_region
      %119 = dma.done [#allocation10], 2048
    $region53: #{tpu_custom_call.1} parent=1 // pred_fallthru
      _
    // Predicated region
    $region54: #{tpu_custom_call.1} parent=1 // pred_check
      _
    $region55: #{tpu_custom_call.1} parent=1 // pred_check_branch
      %121 = sbr.rel (0) target = $region57
    $region56: #{tpu_custom_call.1} parent=1 // pred_region
      %123 = dma.done [#allocation13], 2048
    $region57: #{tpu_custom_call.1} parent=1 // pred_fallthru
      _
    %p124 = scmp.eq.s32.totalorder 0, 0
    // Predicated region
    $region58: #{tpu_custom_call.1} parent=1 // pred_check
      %p125 = pneg %p124
    $region59: #{tpu_custom_call.1} parent=1 // pred_check_branch
      %127 = sbr.rel (%p125) target = $region61
    $region60: #{tpu_custom_call.1} parent=1 // pred_region
      %128 = vst [vmem:[#allocation2] sm:$0xff] 0.0
      %129 = vst [vmem:[#allocation2 + $0x8] sm:$0xff] 0.0
      %130 = vst [vmem:[#allocation2 + $0x10] sm:$0xff] 0.0
      %131 = vst [vmem:[#allocation2 + $0x18] sm:$0xff] 0.0
      %132 = vst [vmem:[#allocation2 + $0x20] sm:$0xff] 0.0
      %133 = vst [vmem:[#allocation2 + $0x28] sm:$0xff] 0.0
      %134 = vst [vmem:[#allocation2 + $0x30] sm:$0xff] 0.0
      %135 = vst [vmem:[#allocation2 + $0x38] sm:$0xff] 0.0
      %136 = vst [vmem:[#allocation2 + $0x40] sm:$0xff] 0.0
      %137 = vst [vmem:[#allocation2 + $0x48] sm:$0xff] 0.0
      %138 = vst [vmem:[#allocation2 + $0x50] sm:$0xff] 0.0
      %139 = vst [vmem:[#allocation2 + $0x58] sm:$0xff] 0.0
      %140 = vst [vmem:[#allocation2 + $0x60] sm:$0xff] 0.0
      %141 = vst [vmem:[#allocation2 + $0x68] sm:$0xff] 0.0
      %142 = vst [vmem:[#allocation2 + $0x70] sm:$0xff] 0.0
      %143 = vst [vmem:[#allocation2 + $0x78] sm:$0xff] 0.0
    $region61: #{tpu_custom_call.1} parent=1 // pred_fallthru
      _
    %s144 = smul.u32 0, 128
    %s145 = sshra.s32 %s144, 3
    %s146 = sand.u32 %s144, 7
    %s147 = smul.addr %s145, 4
    %s148 = scalar_lea.vmem [#allocation6], %s147
    %v149 = vld [vmem:[%s148] sm:$0xf]
    %v150 = vld [vmem:[%s148 + $0x4] sm:$0xf]
    %v151 = vld [vmem:[%s148 + $0x8] sm:$0xf]
    %v152 = vld [vmem:[%s148 + $0xc] sm:$0xf]
    %v153 = vld [vmem:[%s148 + $0x10] sm:$0xf]
    %v154 = vld [vmem:[%s148 + $0x14] sm:$0xf]
    %v155 = vld [vmem:[%s148 + $0x18] sm:$0xf]
    %v156 = vld [vmem:[%s148 + $0x1c] sm:$0xf]
    %v157 = vld [vmem:[%s148 + $0x20] sm:$0xf]
    %v158 = vld [vmem:[%s148 + $0x24] sm:$0xf]
    %v159 = vld [vmem:[%s148 + $0x28] sm:$0xf]
    %v160 = vld [vmem:[%s148 + $0x2c] sm:$0xf]
    %v161 = vld [vmem:[%s148 + $0x30] sm:$0xf]
    %v162 = vld [vmem:[%s148 + $0x34] sm:$0xf]
    %v163 = vld [vmem:[%s148 + $0x38] sm:$0xf]
    %v164 = vld [vmem:[%s148 + $0x3c] sm:$0xf]
    %v165 = vld [vmem:[#allocation2] sm:$0xff]
    %v166 = vld [vmem:[#allocation2 + $0x8] sm:$0xff]
    %v167 = vld [vmem:[#allocation2 + $0x10] sm:$0xff]
    %v168 = vld [vmem:[#allocation2 + $0x18] sm:$0xff]
    %v169 = vld [vmem:[#allocation2 + $0x20] sm:$0xff]
    %v170 = vld [vmem:[#allocation2 + $0x28] sm:$0xff]
    %v171 = vld [vmem:[#allocation2 + $0x30] sm:$0xff]
    %v172 = vld [vmem:[#allocation2 + $0x38] sm:$0xff]
    %v173 = vld [vmem:[#allocation2 + $0x40] sm:$0xff]
    %v174 = vld [vmem:[#allocation2 + $0x48] sm:$0xff]
    %v175 = vld [vmem:[#allocation2 + $0x50] sm:$0xff]
    %v176 = vld [vmem:[#allocation2 + $0x58] sm:$0xff]
    %v177 = vld [vmem:[#allocation2 + $0x60] sm:$0xff]
    %v178 = vld [vmem:[#allocation2 + $0x68] sm:$0xff]
    %v179 = vld [vmem:[#allocation2 + $0x70] sm:$0xff]
    %v180 = vld [vmem:[#allocation2 + $0x78] sm:$0xff]
    %v181 = vld [vmem:[#allocation3] sm:$0xf]
    %v182 = vld [vmem:[#allocation3 + $0x4] sm:$0xf]
    %v183 = vld [vmem:[#allocation3 + $0x8] sm:$0xf]
    %v184 = vld [vmem:[#allocation3 + $0xc] sm:$0xf]
    %v185 = vld [vmem:[#allocation3 + $0x10] sm:$0xf]
    %v186 = vld [vmem:[#allocation3 + $0x14] sm:$0xf]
    %v187 = vld [vmem:[#allocation3 + $0x18] sm:$0xf]
    %v188 = vld [vmem:[#allocation3 + $0x1c] sm:$0xf]
    %v189 = vld [vmem:[#allocation3 + $0x20] sm:$0xf]
    %v190 = vld [vmem:[#allocation3 + $0x24] sm:$0xf]
    %v191 = vld [vmem:[#allocation3 + $0x28] sm:$0xf]
    %v192 = vld [vmem:[#allocation3 + $0x2c] sm:$0xf]
    %v193 = vld [vmem:[#allocation3 + $0x30] sm:$0xf]
    %v194 = vld [vmem:[#allocation3 + $0x34] sm:$0xf]
    %v195 = vld [vmem:[#allocation3 + $0x38] sm:$0xf]
    %v196 = vld [vmem:[#allocation3 + $0x3c] sm:$0xf]
    %v213 = vunpack.c.l.b16 %v181
    %v214 = vunpack.c.l.b16 %v182
    %v215 = vunpack.c.l.b16 %v183
    %v216 = vunpack.c.l.b16 %v184
    %v217 = vunpack.c.l.b16 %v185
    %v218 = vunpack.c.l.b16 %v186
    %v219 = vunpack.c.l.b16 %v187
    %v220 = vunpack.c.l.b16 %v188
    %v221 = vunpack.c.l.b16 %v189
    %v222 = vunpack.c.l.b16 %v190
    %v223 = vunpack.c.l.b16 %v191
    %v224 = vunpack.c.l.b16 %v192
    %v225 = vunpack.c.l.b16 %v193
    %v226 = vunpack.c.l.b16 %v194
    %v227 = vunpack.c.l.b16 %v195
    %v228 = vunpack.c.l.b16 %v196
    %v229 = vpack.c.b16 %v214, %v213
    %v230 = vpack.c.b16 %v216, %v215
    %v231 = vpack.c.b16 %v218, %v217
    %v232 = vpack.c.b16 %v220, %v219
    %v233 = vpack.c.b16 %v222, %v221
    %v234 = vpack.c.b16 %v224, %v223
    %v235 = vpack.c.b16 %v226, %v225
    %v236 = vpack.c.b16 %v228, %v227
    %v261 = vunpack.c.l.b16 %v149
    %v262 = vunpack.c.l.b16 %v150
    %v263 = vunpack.c.l.b16 %v151
    %v264 = vunpack.c.l.b16 %v152
    %v265 = vunpack.c.l.b16 %v153
    %v266 = vunpack.c.l.b16 %v154
    %v267 = vunpack.c.l.b16 %v155
    %v268 = vunpack.c.l.b16 %v156
    %v269 = vunpack.c.l.b16 %v157
    %v270 = vunpack.c.l.b16 %v158
    %v271 = vunpack.c.l.b16 %v159
    %v272 = vunpack.c.l.b16 %v160
    %v273 = vunpack.c.l.b16 %v161
    %v274 = vunpack.c.l.b16 %v162
    %v275 = vunpack.c.l.b16 %v163
    %v276 = vunpack.c.l.b16 %v164
    %v277 = vpack.c.b16 %v262, %v261
    %v278 = vpack.c.b16 %v264, %v263
    %v279 = vpack.c.b16 %v266, %v265
    %v280 = vpack.c.b16 %v268, %v267
    %v281 = vpack.c.b16 %v270, %v269
    %v282 = vpack.c.b16 %v272, %v271
    %v283 = vpack.c.b16 %v274, %v273
    %v284 = vpack.c.b16 %v276, %v275
    %293 = vmatpush.bf16.msra.mxu0 %v284
    %294 = vmatpush.bf16.msra.mxu0 %v283
    %295 = vmatpush.bf16.msra.mxu0 %v282
    %296 = vmatpush.bf16.msra.mxu0 %v281
    %297 = vmatpush.bf16.msra.mxu0 %v280
    %298 = vmatpush.bf16.msra.mxu0 %v279
    %299 = vmatpush.bf16.msra.mxu0 %v278
    %300 = vmatpush.bf16.msra.mxu0 %v277
    %301 = vmatmul.bf16.gmra.mxu0 %v229
    %v302 = vpop.f32.mrf.mxu0
    %v303 = vadd.f32 0.0, %v302
    %v304 = vpop.f32.mrf.mxu0
    %v305 = vadd.f32 0.0, %v304
    %306 = vmatmul.bf16.gmra.mxu0 %v230
    %v307 = vpop.f32.mrf.mxu0
    %v308 = vadd.f32 0.0, %v307
    %v309 = vpop.f32.mrf.mxu0
    %v310 = vadd.f32 0.0, %v309
    %311 = vmatmul.bf16.gmra.mxu0 %v231
    %v312 = vpop.f32.mrf.mxu0
    %v313 = vadd.f32 0.0, %v312
    %v314 = vpop.f32.mrf.mxu0
    %v315 = vadd.f32 0.0, %v314
    %316 = vmatmul.bf16.gmra.mxu0 %v232
    %v317 = vpop.f32.mrf.mxu0
    %v318 = vadd.f32 0.0, %v317
    %v319 = vpop.f32.mrf.mxu0
    %v320 = vadd.f32 0.0, %v319
    %321 = vmatmul.bf16.gmra.mxu0 %v233
    %v322 = vpop.f32.mrf.mxu0
    %v323 = vadd.f32 0.0, %v322
    %v324 = vpop.f32.mrf.mxu0
    %v325 = vadd.f32 0.0, %v324
    %326 = vmatmul.bf16.gmra.mxu0 %v234
    %v327 = vpop.f32.mrf.mxu0
    %v328 = vadd.f32 0.0, %v327
    %v329 = vpop.f32.mrf.mxu0
    %v330 = vadd.f32 0.0, %v329
    %331 = vmatmul.bf16.gmra.mxu0 %v235
    %v332 = vpop.f32.mrf.mxu0
    %v333 = vadd.f32 0.0, %v332
    %v334 = vpop.f32.mrf.mxu0
    %v335 = vadd.f32 0.0, %v334
    %336 = vmatmul.bf16.gmra.mxu0 %v236
    %v337 = vpop.f32.mrf.mxu0
    %v338 = vadd.f32 0.0, %v337
    %v339 = vpop.f32.mrf.mxu0
    %v340 = vadd.f32 0.0, %v339
    %341 = vdwg.mxu0
    %v342 = vadd.f32 %v165, %v303
    %v343 = vadd.f32 %v166, %v305
    %v344 = vadd.f32 %v167, %v308
    %v345 = vadd.f32 %v168, %v310
    %v346 = vadd.f32 %v169, %v313
    %v347 = vadd.f32 %v170, %v315
    %v348 = vadd.f32 %v171, %v318
    %v349 = vadd.f32 %v172, %v320
    %v350 = vadd.f32 %v173, %v323
    %v351 = vadd.f32 %v174, %v325
    %v352 = vadd.f32 %v175, %v328
    %v353 = vadd.f32 %v176, %v330
    %v354 = vadd.f32 %v177, %v333
    %v355 = vadd.f32 %v178, %v335
    %v356 = vadd.f32 %v179, %v338
    %v357 = vadd.f32 %v180, %v340
    %358 = vst [vmem:[#allocation2] sm:$0xff] %v342
    %359 = vst [vmem:[#allocation2 + $0x8] sm:$0xff] %v343
    %360 = vst [vmem:[#allocation2 + $0x10] sm:$0xff] %v344
    %361 = vst [vmem:[#allocation2 + $0x18] sm:$0xff] %v345
    %362 = vst [vmem:[#allocation2 + $0x20] sm:$0xff] %v346
    %363 = vst [vmem:[#allocation2 + $0x28] sm:$0xff] %v347
    %364 = vst [vmem:[#allocation2 + $0x30] sm:$0xff] %v348
    %365 = vst [vmem:[#allocation2 + $0x38] sm:$0xff] %v349
    %366 = vst [vmem:[#allocation2 + $0x40] sm:$0xff] %v350
    %367 = vst [vmem:[#allocation2 + $0x48] sm:$0xff] %v351
    %368 = vst [vmem:[#allocation2 + $0x50] sm:$0xff] %v352
    %369 = vst [vmem:[#allocation2 + $0x58] sm:$0xff] %v353
    %370 = vst [vmem:[#allocation2 + $0x60] sm:$0xff] %v354
    %371 = vst [vmem:[#allocation2 + $0x68] sm:$0xff] %v355
    %372 = vst [vmem:[#allocation2 + $0x70] sm:$0xff] %v356
    %373 = vst [vmem:[#allocation2 + $0x78] sm:$0xff] %v357
    // Predicated region
    $region62: #{tpu_custom_call.1} parent=1 // pred_check
      %p374 = pneg %p124
    $region63: #{tpu_custom_call.1} parent=1 // pred_check_branch
      %376 = sbr.rel (%p374) target = $region65
    $region64: #{tpu_custom_call.1} parent=1 // pred_region
      %v377 = vld [vmem:[#allocation2] sm:$0xff]
      %v378 = vld [vmem:[#allocation2 + $0x8] sm:$0xff]
      %v379 = vld [vmem:[#allocation2 + $0x10] sm:$0xff]
      %v380 = vld [vmem:[#allocation2 + $0x18] sm:$0xff]
      %v381 = vld [vmem:[#allocation2 + $0x20] sm:$0xff]
      %v382 = vld [vmem:[#allocation2 + $0x28] sm:$0xff]
      %v383 = vld [vmem:[#allocation2 + $0x30] sm:$0xff]
      %v384 = vld [vmem:[#allocation2 + $0x38] sm:$0xff]
      %v385 = vld [vmem:[#allocation2 + $0x40] sm:$0xff]
      %v386 = vld [vmem:[#allocation2 + $0x48] sm:$0xff]
      %v387 = vld [vmem:[#allocation2 + $0x50] sm:$0xff]
      %v388 = vld [vmem:[#allocation2 + $0x58] sm:$0xff]
      %v389 = vld [vmem:[#allocation2 + $0x60] sm:$0xff]
      %v390 = vld [vmem:[#allocation2 + $0x68] sm:$0xff]
      %v391 = vld [vmem:[#allocation2 + $0x70] sm:$0xff]
      %v392 = vld [vmem:[#allocation2 + $0x78] sm:$0xff]
      %v393 = vld [vmem:[#allocation9] sm:$0xff]
      %v394 = vld [vmem:[#allocation9 + $0x8] sm:$0xff]
      %v395 = vld [vmem:[#allocation9 + $0x10] sm:$0xff]
      %v396 = vld [vmem:[#allocation9 + $0x18] sm:$0xff]
      %v397 = vld [vmem:[#allocation9 + $0x20] sm:$0xff]
      %v398 = vld [vmem:[#allocation9 + $0x28] sm:$0xff]
      %v399 = vld [vmem:[#allocation9 + $0x30] sm:$0xff]
      %v400 = vld [vmem:[#allocation9 + $0x38] sm:$0xff]
      %v401 = vld [vmem:[#allocation9 + $0x40] sm:$0xff]
      %v402 = vld [vmem:[#allocation9 + $0x48] sm:$0xff]
      %v403 = vld [vmem:[#allocation9 + $0x50] sm:$0xff]
      %v404 = vld [vmem:[#allocation9 + $0x58] sm:$0xff]
      %v405 = vld [vmem:[#allocation9 + $0x60] sm:$0xff]
      %v406 = vld [vmem:[#allocation9 + $0x68] sm:$0xff]
      %v407 = vld [vmem:[#allocation9 + $0x70] sm:$0xff]
      %v408 = vld [vmem:[#allocation9 + $0x78] sm:$0xff]
      %v409 = vld [vmem:[%s4] sm:$0x1]
      %v411 = vperm.slane %v409, 0
      %413 = vmatpush.msra.mxu0 %v408
      %414 = vmatpush.msra.mxu0 %v407
      %415 = vmatpush.msra.mxu0 %v406
      %416 = vmatpush.msra.mxu0 %v405
      %417 = vmatpush.msra.mxu0 %v404
      %418 = vmatpush.msra.mxu0 %v403
      %419 = vmatpush.msra.mxu0 %v402
      %420 = vmatpush.msra.mxu0 %v401
      %421 = vmatpush.msra.mxu0 %v400
      %422 = vmatpush.msra.mxu0 %v399
      %423 = vmatpush.msra.mxu0 %v398
      %424 = vmatpush.msra.mxu0 %v397
      %425 = vmatpush.msra.mxu0 %v396
      %426 = vmatpush.msra.mxu0 %v395
      %427 = vmatpush.msra.mxu0 %v394
      %428 = vmatpush.msra.mxu0 %v393
      %429 = vmatmul.f32.gmra.mxu0 %v377
      %v430 = vpop.f32.mrf.mxu0
      %v431 = vadd.f32 %v411, %v430
      %432 = vmatmul.f32.gmra.mxu0 %v378
      %v433 = vpop.f32.mrf.mxu0
      %v434 = vadd.f32 %v411, %v433
      %435 = vmatmul.f32.gmra.mxu0 %v379
      %v436 = vpop.f32.mrf.mxu0
      %v437 = vadd.f32 %v411, %v436
      %438 = vmatmul.f32.gmra.mxu0 %v380
      %v439 = vpop.f32.mrf.mxu0
      %v440 = vadd.f32 %v411, %v439
      %441 = vmatmul.f32.gmra.mxu0 %v381
      %v442 = vpop.f32.mrf.mxu0
      %v443 = vadd.f32 %v411, %v442
      %444 = vmatmul.f32.gmra.mxu0 %v382
      %v445 = vpop.f32.mrf.mxu0
      %v446 = vadd.f32 %v411, %v445
      %447 = vmatmul.f32.gmra.mxu0 %v383
      %v448 = vpop.f32.mrf.mxu0
      %v449 = vadd.f32 %v411, %v448
      %450 = vmatmul.f32.gmra.mxu0 %v384
      %v451 = vpop.f32.mrf.mxu0
      %v452 = vadd.f32 %v411, %v451
      %453 = vmatmul.f32.gmra.mxu0 %v385
      %v454 = vpop.f32.mrf.mxu0
      %v455 = vadd.f32 %v411, %v454
      %456 = vmatmul.f32.gmra.mxu0 %v386
      %v457 = vpop.f32.mrf.mxu0
      %v458 = vadd.f32 %v411, %v457
      %459 = vmatmul.f32.gmra.mxu0 %v387
      %v460 = vpop.f32.mrf.mxu0
      %v461 = vadd.f32 %v411, %v460
      %462 = vmatmul.f32.gmra.mxu0 %v388
      %v463 = vpop.f32.mrf.mxu0
      %v464 = vadd.f32 %v411, %v463
      %465 = vmatmul.f32.gmra.mxu0 %v389
      %v466 = vpop.f32.mrf.mxu0
      %v467 = vadd.f32 %v411, %v466
      %468 = vmatmul.f32.gmra.mxu0 %v390
      %v469 = vpop.f32.mrf.mxu0
      %v470 = vadd.f32 %v411, %v469
      %471 = vmatmul.f32.gmra.mxu0 %v391
      %v472 = vpop.f32.mrf.mxu0
      %v473 = vadd.f32 %v411, %v472
      %474 = vmatmul.f32.gmra.mxu0 %v392
      %v475 = vpop.f32.mrf.mxu0
      %v476 = vadd.f32 %v411, %v475
      %477 = vdwg.mxu0
      %v478 = vmax.f32 %v431, 0.0
      %v479 = vmax.f32 %v434, 0.0
      %v480 = vmax.f32 %v437, 0.0
      %v481 = vmax.f32 %v440, 0.0
      %v482 = vmax.f32 %v443, 0.0
      %v483 = vmax.f32 %v446, 0.0
      %v484 = vmax.f32 %v449, 0.0
      %v485 = vmax.f32 %v452, 0.0
      %v486 = vmax.f32 %v455, 0.0
      %v487 = vmax.f32 %v458, 0.0
      %v488 = vmax.f32 %v461, 0.0
      %v489 = vmax.f32 %v464, 0.0
      %v490 = vmax.f32 %v467, 0.0
      %v491 = vmax.f32 %v470, 0.0
      %v492 = vmax.f32 %v473, 0.0
      %v493 = vmax.f32 %v476, 0.0
      %v494 = vld [vmem:[#allocation8] sm:$0xf]
      %v495 = vld [vmem:[#allocation8 + $0x4] sm:$0xf]
      %v496 = vld [vmem:[#allocation8 + $0x8] sm:$0xf]
      %v497 = vld [vmem:[#allocation8 + $0xc] sm:$0xf]
      %v498 = vld [vmem:[#allocation8 + $0x10] sm:$0xf]
      %v499 = vld [vmem:[#allocation8 + $0x14] sm:$0xf]
      %v500 = vld [vmem:[#allocation8 + $0x18] sm:$0xf]
      %v501 = vld [vmem:[#allocation8 + $0x1c] sm:$0xf]
      %v502 = vld [vmem:[#allocation8 + $0x20] sm:$0xf]
      %v503 = vld [vmem:[#allocation8 + $0x24] sm:$0xf]
      %v504 = vld [vmem:[#allocation8 + $0x28] sm:$0xf]
      %v505 = vld [vmem:[#allocation8 + $0x2c] sm:$0xf]
      %v506 = vld [vmem:[#allocation8 + $0x30] sm:$0xf]
      %v507 = vld [vmem:[#allocation8 + $0x34] sm:$0xf]
      %v508 = vld [vmem:[#allocation8 + $0x38] sm:$0xf]
      %v509 = vld [vmem:[#allocation8 + $0x3c] sm:$0xf]
      %v510 = vunpack.c.l.bf16 %v494
      %v511 = vunpack.c.l.bf16 %v495
      %v512 = vunpack.c.l.bf16 %v496
      %v513 = vunpack.c.l.bf16 %v497
      %v514 = vunpack.c.l.bf16 %v498
      %v515 = vunpack.c.l.bf16 %v499
      %v516 = vunpack.c.l.bf16 %v500
      %v517 = vunpack.c.l.bf16 %v501
      %v518 = vunpack.c.l.bf16 %v502
      %v519 = vunpack.c.l.bf16 %v503
      %v520 = vunpack.c.l.bf16 %v504
      %v521 = vunpack.c.l.bf16 %v505
      %v522 = vunpack.c.l.bf16 %v506
      %v523 = vunpack.c.l.bf16 %v507
      %v524 = vunpack.c.l.bf16 %v508
      %v525 = vunpack.c.l.bf16 %v509
      %v526 = vld [vmem:[#allocation11] sm:$0xff]
      %v527 = vld [vmem:[#allocation11 + $0x8] sm:$0xff]
      %v528 = vld [vmem:[#allocation11 + $0x10] sm:$0xff]
      %v529 = vld [vmem:[#allocation11 + $0x18] sm:$0xff]
      %v530 = vld [vmem:[#allocation11 + $0x20] sm:$0xff]
      %v531 = vld [vmem:[#allocation11 + $0x28] sm:$0xff]
      %v532 = vld [vmem:[#allocation11 + $0x30] sm:$0xff]
      %v533 = vld [vmem:[#allocation11 + $0x38] sm:$0xff]
      %v534 = vld [vmem:[#allocation11 + $0x40] sm:$0xff]
      %v535 = vld [vmem:[#allocation11 + $0x48] sm:$0xff]
      %v536 = vld [vmem:[#allocation11 + $0x50] sm:$0xff]
      %v537 = vld [vmem:[#allocation11 + $0x58] sm:$0xff]
      %v538 = vld [vmem:[#allocation11 + $0x60] sm:$0xff]
      %v539 = vld [vmem:[#allocation11 + $0x68] sm:$0xff]
      %v540 = vld [vmem:[#allocation11 + $0x70] sm:$0xff]
      %v541 = vld [vmem:[#allocation11 + $0x78] sm:$0xff]
      %v542 = vld [vmem:[#allocation12] sm:$0xff]
      %v543 = vld [vmem:[#allocation12 + $0x8] sm:$0xff]
      %v544 = vld [vmem:[#allocation12 + $0x10] sm:$0xff]
      %v545 = vld [vmem:[#allocation12 + $0x18] sm:$0xff]
      %v546 = vld [vmem:[#allocation12 + $0x20] sm:$0xff]
      %v547 = vld [vmem:[#allocation12 + $0x28] sm:$0xff]
      %v548 = vld [vmem:[#allocation12 + $0x30] sm:$0xff]
      %v549 = vld [vmem:[#allocation12 + $0x38] sm:$0xff]
      %v550 = vld [vmem:[#allocation12 + $0x40] sm:$0xff]
      %v551 = vld [vmem:[#allocation12 + $0x48] sm:$0xff]
      %v552 = vld [vmem:[#allocation12 + $0x50] sm:$0xff]
      %v553 = vld [vmem:[#allocation12 + $0x58] sm:$0xff]
      %v554 = vld [vmem:[#allocation12 + $0x60] sm:$0xff]
      %v555 = vld [vmem:[#allocation12 + $0x68] sm:$0xff]
      %v556 = vld [vmem:[#allocation12 + $0x70] sm:$0xff]
      %v557 = vld [vmem:[#allocation12 + $0x78] sm:$0xff]
      %558 = vmatpush.msra.mxu0 %v557
      %559 = vmatpush.msra.mxu0 %v556
      %560 = vmatpush.msra.mxu0 %v555
      %561 = vmatpush.msra.mxu0 %v554
      %562 = vmatpush.msra.mxu0 %v553
      %563 = vmatpush.msra.mxu0 %v552
      %564 = vmatpush.msra.mxu0 %v551
      %565 = vmatpush.msra.mxu0 %v550
      %566 = vmatpush.msra.mxu0 %v549
      %567 = vmatpush.msra.mxu0 %v548
      %568 = vmatpush.msra.mxu0 %v547
      %569 = vmatpush.msra.mxu0 %v546
      %570 = vmatpush.msra.mxu0 %v545
      %571 = vmatpush.msra.mxu0 %v544
      %572 = vmatpush.msra.mxu0 %v543
      %573 = vmatpush.msra.mxu0 %v542
      %574 = vmatmul.f32.gmra.mxu0 %v478
      %v575 = vpop.f32.mrf.mxu0
      %v576 = vadd.f32 0.0, %v575
      %577 = vmatmul.f32.gmra.mxu0 %v479
      %v578 = vpop.f32.mrf.mxu0
      %v579 = vadd.f32 0.0, %v578
      %580 = vmatmul.f32.gmra.mxu0 %v480
      %v581 = vpop.f32.mrf.mxu0
      %v582 = vadd.f32 0.0, %v581
      %583 = vmatmul.f32.gmra.mxu0 %v481
      %v584 = vpop.f32.mrf.mxu0
      %v585 = vadd.f32 0.0, %v584
      %586 = vmatmul.f32.gmra.mxu0 %v482
      %v587 = vpop.f32.mrf.mxu0
      %v588 = vadd.f32 0.0, %v587
      %589 = vmatmul.f32.gmra.mxu0 %v483
      %v590 = vpop.f32.mrf.mxu0
      %v591 = vadd.f32 0.0, %v590
      %592 = vmatmul.f32.gmra.mxu0 %v484
      %v593 = vpop.f32.mrf.mxu0
      %v594 = vadd.f32 0.0, %v593
      %595 = vmatmul.f32.gmra.mxu0 %v485
      %v596 = vpop.f32.mrf.mxu0
      %v597 = vadd.f32 0.0, %v596
      %598 = vmatmul.f32.gmra.mxu0 %v486
      %v599 = vpop.f32.mrf.mxu0
      %v600 = vadd.f32 0.0, %v599
      %601 = vmatmul.f32.gmra.mxu0 %v487
      %v602 = vpop.f32.mrf.mxu0
      %v603 = vadd.f32 0.0, %v602
      %604 = vmatmul.f32.gmra.mxu0 %v488
      %v605 = vpop.f32.mrf.mxu0
      %v606 = vadd.f32 0.0, %v605
      %607 = vmatmul.f32.gmra.mxu0 %v489
      %v608 = vpop.f32.mrf.mxu0
      %v609 = vadd.f32 0.0, %v608
      %610 = vmatmul.f32.gmra.mxu0 %v490
      %v611 = vpop.f32.mrf.mxu0
      %v612 = vadd.f32 0.0, %v611
      %613 = vmatmul.f32.gmra.mxu0 %v491
      %v614 = vpop.f32.mrf.mxu0
      %v615 = vadd.f32 0.0, %v614
      %616 = vmatmul.f32.gmra.mxu0 %v492
      %v617 = vpop.f32.mrf.mxu0
      %v618 = vadd.f32 0.0, %v617
      %619 = vmatmul.f32.gmra.mxu0 %v493
      %v620 = vpop.f32.mrf.mxu0
      %v621 = vadd.f32 0.0, %v620
      %622 = vdwg.mxu0
      %623 = vmatpush.msra.mxu0 %v541
      %624 = vmatpush.msra.mxu0 %v540
      %625 = vmatpush.msra.mxu0 %v539
      %626 = vmatpush.msra.mxu0 %v538
      %627 = vmatpush.msra.mxu0 %v537
      %628 = vmatpush.msra.mxu0 %v536
      %629 = vmatpush.msra.mxu0 %v535
      %630 = vmatpush.msra.mxu0 %v534
      %631 = vmatpush.msra.mxu0 %v533
      %632 = vmatpush.msra.mxu0 %v532
      %633 = vmatpush.msra.mxu0 %v531
      %634 = vmatpush.msra.mxu0 %v530
      %635 = vmatpush.msra.mxu0 %v529
      %636 = vmatpush.msra.mxu0 %v528
      %637 = vmatpush.msra.mxu0 %v527
      %638 = vmatpush.msra.mxu0 %v526
      %639 = vmatmul.f32.gmra.mxu0 %v510
      %v640 = vpop.f32.mrf.mxu0
      %v641 = vadd.f32 %v576, %v640
      %642 = vmatmul.f32.gmra.mxu0 %v511
      %v643 = vpop.f32.mrf.mxu0
      %v644 = vadd.f32 %v579, %v643
      %645 = vmatmul.f32.gmra.mxu0 %v512
      %v646 = vpop.f32.mrf.mxu0
      %v647 = vadd.f32 %v582, %v646
      %648 = vmatmul.f32.gmra.mxu0 %v513
      %v649 = vpop.f32.mrf.mxu0
      %v650 = vadd.f32 %v585, %v649
      %651 = vmatmul.f32.gmra.mxu0 %v514
      %v652 = vpop.f32.mrf.mxu0
      %v653 = vadd.f32 %v588, %v652
      %654 = vmatmul.f32.gmra.mxu0 %v515
      %v655 = vpop.f32.mrf.mxu0
      %v656 = vadd.f32 %v591, %v655
      %657 = vmatmul.f32.gmra.mxu0 %v516
      %v658 = vpop.f32.mrf.mxu0
      %v659 = vadd.f32 %v594, %v658
      %660 = vmatmul.f32.gmra.mxu0 %v517
      %v661 = vpop.f32.mrf.mxu0
      %v662 = vadd.f32 %v597, %v661
      %663 = vmatmul.f32.gmra.mxu0 %v518
      %v664 = vpop.f32.mrf.mxu0
      %v665 = vadd.f32 %v600, %v664
      %666 = vmatmul.f32.gmra.mxu0 %v519
      %v667 = vpop.f32.mrf.mxu0
      %v668 = vadd.f32 %v603, %v667
      %669 = vmatmul.f32.gmra.mxu0 %v520
      %v670 = vpop.f32.mrf.mxu0
      %v671 = vadd.f32 %v606, %v670
      %672 = vmatmul.f32.gmra.mxu0 %v521
      %v673 = vpop.f32.mrf.mxu0
      %v674 = vadd.f32 %v609, %v673
      %675 = vmatmul.f32.gmra.mxu0 %v522
      %v676 = vpop.f32.mrf.mxu0
      %v677 = vadd.f32 %v612, %v676
      %678 = vmatmul.f32.gmra.mxu0 %v523
      %v679 = vpop.f32.mrf.mxu0
      %v680 = vadd.f32 %v615, %v679
      %681 = vmatmul.f32.gmra.mxu0 %v524
      %v682 = vpop.f32.mrf.mxu0
      %v683 = vadd.f32 %v618, %v682
      %684 = vmatmul.f32.gmra.mxu0 %v525
      %v685 = vpop.f32.mrf.mxu0
      %v686 = vadd.f32 %v621, %v685
      %687 = vdwg.mxu0
      %v688 = vld [vmem:[%s7] sm:$0x1]
      %v690 = vperm.slane %v688, 0
      %v692 = vadd.f32 %v641, %v690
      %v693 = vadd.f32 %v644, %v690
      %v694 = vadd.f32 %v647, %v690
      %v695 = vadd.f32 %v650, %v690
      %v696 = vadd.f32 %v653, %v690
      %v697 = vadd.f32 %v656, %v690
      %v698 = vadd.f32 %v659, %v690
      %v699 = vadd.f32 %v662, %v690
      %v700 = vadd.f32 %v665, %v690
      %v701 = vadd.f32 %v668, %v690
      %v702 = vadd.f32 %v671, %v690
      %v703 = vadd.f32 %v674, %v690
      %v704 = vadd.f32 %v677, %v690
      %v705 = vadd.f32 %v680, %v690
      %v706 = vadd.f32 %v683, %v690
      %v707 = vadd.f32 %v686, %v690
      %v708 = vmax.f32 %v692, 0.0
      %v709 = vmax.f32 %v693, 0.0
      %v710 = vmax.f32 %v694, 0.0
      %v711 = vmax.f32 %v695, 0.0
      %v712 = vmax.f32 %v696, 0.0
      %v713 = vmax.f32 %v697, 0.0
      %v714 = vmax.f32 %v698, 0.0
      %v715 = vmax.f32 %v699, 0.0
      %v716 = vmax.f32 %v700, 0.0
      %v717 = vmax.f32 %v701, 0.0
      %v718 = vmax.f32 %v702, 0.0
      %v719 = vmax.f32 %v703, 0.0
      %v720 = vmax.f32 %v704, 0.0
      %v721 = vmax.f32 %v705, 0.0
      %v722 = vmax.f32 %v706, 0.0
      %v723 = vmax.f32 %v707, 0.0
      %v724 = vpack.c.bf16 %v708, %v708
      %v725 = vpack.c.bf16 %v709, %v709
      %v726 = vpack.c.bf16 %v710, %v710
      %v727 = vpack.c.bf16 %v711, %v711
      %v728 = vpack.c.bf16 %v712, %v712
      %v729 = vpack.c.bf16 %v713, %v713
      %v730 = vpack.c.bf16 %v714, %v714
      %v731 = vpack.c.bf16 %v715, %v715
      %v732 = vpack.c.bf16 %v716, %v716
      %v733 = vpack.c.bf16 %v717, %v717
      %v734 = vpack.c.bf16 %v718, %v718
      %v735 = vpack.c.bf16 %v719, %v719
      %v736 = vpack.c.bf16 %v720, %v720
      %v737 = vpack.c.bf16 %v721, %v721
      %v738 = vpack.c.bf16 %v722, %v722
      %v739 = vpack.c.bf16 %v723, %v723
      %740 = vst [vmem:[#allocation14] sm:$0xf] %v724
      %741 = vst [vmem:[#allocation14 + $0x4] sm:$0xf] %v725
      %742 = vst [vmem:[#allocation14 + $0x8] sm:$0xf] %v726
      %743 = vst [vmem:[#allocation14 + $0xc] sm:$0xf] %v727
      %744 = vst [vmem:[#allocation14 + $0x10] sm:$0xf] %v728
      %745 = vst [vmem:[#allocation14 + $0x14] sm:$0xf] %v729
      %746 = vst [vmem:[#allocation14 + $0x18] sm:$0xf] %v730
      %747 = vst [vmem:[#allocation14 + $0x1c] sm:$0xf] %v731
      %748 = vst [vmem:[#allocation14 + $0x20] sm:$0xf] %v732
      %749 = vst [vmem:[#allocation14 + $0x24] sm:$0xf] %v733
      %750 = vst [vmem:[#allocation14 + $0x28] sm:$0xf] %v734
      %751 = vst [vmem:[#allocation14 + $0x2c] sm:$0xf] %v735
      %752 = vst [vmem:[#allocation14 + $0x30] sm:$0xf] %v736
      %753 = vst [vmem:[#allocation14 + $0x34] sm:$0xf] %v737
      %754 = vst [vmem:[#allocation14 + $0x38] sm:$0xf] %v738
      %755 = vst [vmem:[#allocation14 + $0x3c] sm:$0xf] %v739
    $region65: #{tpu_custom_call.1} parent=1 // pred_fallthru
      _
    // Predicated region
    $region66: #{tpu_custom_call.1} parent=1 // pred_check
      _
    $region67: #{tpu_custom_call.1} parent=1 // pred_check_branch
      %757 = sbr.rel (0) target = $region69
    $region68: #{tpu_custom_call.1} parent=1 // pred_region
      %759 = vsyncadd [#allocation5], 0
      %s760 = sshll.u32 [#allocation14], 4
      %s761 = int_to_ptr.vmem [resolvable:$true] %s760
      %s762 = sshll.u32 %s8, 4
      %s763 = int_to_ptr.hbm [resolvable:$true] %s762
      %768 = dma.vmem_to_hbm [thread:$0]  %s761, 1024, %s763, [#allocation5], 64, 64, 4
    $region69: #{tpu_custom_call.1} parent=1 // pred_fallthru
      _
    // Predicated region
    $region70: #{tpu_custom_call.1} parent=1 // pred_check
      _
    $region71: #{tpu_custom_call.1} parent=1 // pred_check_branch
      %770 = sbr.rel (0) target = $region73
    $region72: #{tpu_custom_call.1} parent=1 // pred_region
      %772 = dma.done [#allocation5], 1024
    $region73: #{tpu_custom_call.1} parent=1 // pred_fallthru
      _
    %773 = vsyncpa [#allocation4], 1
    %774 = vsyncpa [#allocation7], 1
    %775 = vsyncpa [#allocation10], 1
    %776 = vsyncpa [#allocation13], 1
    %777 = vsyncpa [#allocation5], 1

</llo_original>
